<compile_context>
chip_gen: v5e
topology: v5e:2x2
jax: 0.10.0
libtpu: 0.0.40
codegen_flags: <defaults>
</compile_context>

<pallas_src>
import functools

import jax
import jax.numpy as jnp
from jax.experimental import pallas as pl
from jax.experimental.pallas import tpu as pltpu


# ------------------------------ tiling helpers -------------------------------

def _round_up(x, m):
    return ((x + m - 1) // m) * m


def _pick_tile(dim, cap, aligns=(256, 128, 16, 8)):
    """Largest tile <= cap that divides `dim`, preferring larger alignments;
    falls back to the full dimension (always a legal block size)."""
    if dim <= cap:
        return dim
    for align in aligns:
        cand = (cap // align) * align
        while cand >= align:
            if dim % cand == 0:
                return cand
            cand -= align
    return dim


@functools.lru_cache(maxsize=None)
def _vmem_limit_bytes():
    """Generation-aware scoped-VMEM limit (~85% of physical, capped)."""
    try:
        cap = int(pltpu.get_tpu_info().vmem_capacity_bytes)
    except Exception:
        cap = 64 * 1024 * 1024
    return max(32 * 1024 * 1024, min(int(cap * 0.85), 112 * 1024 * 1024))


# ------------------------------ Pallas kernels -------------------------------

def lstm_layer_kernel(x_ref, c_ref, hu_ref,
                      wt_ref, hpt_ref, f1t_ref, f2t_ref,
                      g1_ref, b1_ref, g2_ref, b2_ref,
                      c_out_ref, h_out_ref, y_ref,
                      *, d_model, res_conn):
    eps = 1e-6
    d = d_model

    x = x_ref[...].astype(jnp.float32)            # (tile_t, d)
    tile_t = x.shape[0]
    c_prev = c_ref[...].astype(jnp.float32)       # (1, d)
    hu = hu_ref[...]                              # (1, 4d) f32 = h_prev @ U^T + b

    # LayerNorm statistics computed once (LN1 and LN2 both act on raw x).
    mu = jnp.mean(x, axis=-1, keepdims=True)
    var = jnp.mean((x - mu) ** 2, axis=-1, keepdims=True)
    x_hat = (x - mu) * jax.lax.rsqrt(var + eps)
    xn1 = x_hat * g1_ref[...] + b1_ref[...]
    xn2 = x_hat * g2_ref[...] + b2_ref[...]

    # Gate matmul: xn1 @ W^T (K = D), bf16 in / f32 acc; the time-invariant
    # h_prev @ U^T + b term is precomputed and simply broadcast-added.
    lin = jnp.dot(xn1.astype(jnp.bfloat16), wt_ref[...],
                  preferred_element_type=jnp.float32) + hu

    i_gate = jax.nn.sigmoid(lin[:, 0 * d:1 * d])
    f_gate = jax.nn.sigmoid(lin[:, 1 * d:2 * d])
    o_gate = jax.nn.sigmoid(lin[:, 2 * d:3 * d])
    c_tilde = jnp.tanh(lin[:, 3 * d:4 * d])

    c_next = f_gate * c_prev + i_gate * c_tilde
    h_next = o_gate * jnp.tanh(c_next)

    # Position-wise FFN on the second LayerNorm branch, plus h_proj(h_next).
    hidden = jnp.maximum(
        jnp.dot(xn2.astype(jnp.bfloat16), f1t_ref[...],
                preferred_element_type=jnp.float32), 0.0)
    y = (jnp.dot(hidden.astype(jnp.bfloat16), f2t_ref[...],
                 preferred_element_type=jnp.float32)
         + jnp.dot(h_next.astype(jnp.bfloat16), hpt_ref[...],
                   preferred_element_type=jnp.float32))
    if res_conn:
        y = y + x

    y_ref[...] = y.astype(y_ref.dtype)

    # The torch module returns only the final time step's state; emit it once
    # from the last time tile (the [B,1,D] output block stays resident across
    # the "arbitrary" time axis and is flushed after its last iteration).
    @pl.when(pl.program_id(1) == pl.num_programs(1) - 1)
    def _():
        c_out_ref[...] = c_next[tile_t - 1:tile_t, :]
        h_out_ref[...] = h_next[tile_t - 1:tile_t, :]


def logits_kernel(y_ref, et_ref, o_ref):
    # layer_output tile [tn, D] @ embed^T tile [D, tv] -> logits tile [tn, tv]
    o_ref[...] = jnp.dot(y_ref[...].astype(jnp.bfloat16), et_ref[...],
                         preferred_element_type=jnp.float32)


# -------------------------------- wrappers -----------------------------------

def lstm_layer_pallas(x, c_prev, hu, lp, *, d_model, res_conn, time_tile=None):
    """x: [B, T, D] f32; c_prev: [B, 1, D] f32; hu: [B, 1, 4D] f32 (= h_prev@U^T+b).
    Returns (c_last [B,1,D], h_last [B,1,D], y [B,T,D])."""
    b, t, d = x.shape
    tile_t = _pick_tile(t, 1024) if time_tile is None else time_tile
    grid = (b, t // tile_t)

    x_spec = pl.BlockSpec((None, tile_t, d), lambda i, j: (i, j, 0))
    cstate_spec = pl.BlockSpec((None, 1, d), lambda i, j: (i, 0, 0))
    hu_spec = pl.BlockSpec((None, 1, 4 * d), lambda i, j: (i, 0, 0))

    def wspec(arr):
        # Grid-invariant weights: single-buffered (no double-buffering waste).
        return pl.BlockSpec(arr.shape, lambda i, j: (0,) * arr.ndim,
                            pipeline_mode=pl.Buffered(1))

    kern = functools.partial(lstm_layer_kernel, d_model=d_model, res_conn=res_conn)
    out_shape = (jax.ShapeDtypeStruct((b, 1, d), jnp.float32),
                 jax.ShapeDtypeStruct((b, 1, d), jnp.float32),
                 jax.ShapeDtypeStruct((b, t, d), jnp.float32))

    c_last, h_last, y = pl.pallas_call(
        kern,
        out_shape=out_shape,
        grid_spec=pltpu.PrefetchScalarGridSpec(
            num_scalar_prefetch=0,
            grid=grid,
            in_specs=[x_spec, cstate_spec, hu_spec,
                      wspec(lp["Wt"]), wspec(lp["hpt"]),
                      wspec(lp["f1t"]), wspec(lp["f2t"]),
                      wspec(lp["g1"]), wspec(lp["b1"]),
                      wspec(lp["g2"]), wspec(lp["b2"])],
            out_specs=[cstate_spec, cstate_spec, x_spec],
        ),
        compiler_params=pltpu.CompilerParams(
            dimension_semantics=("parallel", "arbitrary"),
            vmem_limit_bytes=_vmem_limit_bytes()),
    )(x, c_prev, hu,
      lp["Wt"], lp["hpt"], lp["f1t"], lp["f2t"],
      lp["g1"], lp["b1"], lp["g2"], lp["b2"])
    return c_last, h_last, y


def logits_pallas(y, embed_t, vocab_size):
    """y: [N, D] f32; embed_t: [D, Vpad] bf16 (lane-padded) -> logits [N, V] f32."""
    n, d = y.shape
    _, vp = embed_t.shape                       # vp is a multiple of 128 (padded at init)

    tn = min(1024, _round_up(n, 8))
    n_pad = _round_up(n, tn)
    if n_pad != n:
        y = jnp.pad(y, ((0, n_pad - n), (0, 0)))
    tv = _pick_tile(vp, 2048, aligns=(512, 256, 128))  # always finds a lane-aligned divisor

    grid = (n_pad // tn, vp // tv)
    out = pl.pallas_call(
        logits_kernel,
        out_shape=jax.ShapeDtypeStruct((n_pad, vp), jnp.float32),
        grid_spec=pltpu.PrefetchScalarGridSpec(
            num_scalar_prefetch=0,
            grid=grid,
            in_specs=[pl.BlockSpec((tn, d), lambda i, j: (i, 0)),
                      pl.BlockSpec((d, tv), lambda i, j: (0, j))],
            out_specs=pl.BlockSpec((tn, tv), lambda i, j: (i, j)),
        ),
        compiler_params=pltpu.CompilerParams(
            dimension_semantics=("parallel", "arbitrary"),
            vmem_limit_bytes=_vmem_limit_bytes()),
    )(y, embed_t)
    return out[:n, :vocab_size]


def lstm_forward(x_ids, c_prev, h_prev, params, *, res_conn=False):
    """Mirrors LSTM.forward (training=False / inference dropout).

    x_ids : [B, T] int32 token ids
    c_prev, h_prev : [L, B, D] f32 (kept fixed for every time step, as in torch)
    returns (c_next [L,B,D], h_next [L,B,D], logits [B,T,V])
    """
    b, t = x_ids.shape
    embed = params["embed"]                       # [V, D] f32
    v, d = embed.shape

    layer_in = embed[x_ids].astype(jnp.float32)   # [B, T, D]  (embedding gather glue)
    # TODO(synk): emb_dropout / dropout (training=True) not reproduced — identity here.

    c_last, h_last = [], []
    for m, lp in enumerate(params["layers"]):
        # Time-invariant state contribution, computed ONCE per (layer, batch):
        #   hu = h_prev @ U^T + b   (gate bias folded in)  -> [B, 1, 4D] f32
        hu = (h_prev[m] @ lp["Ut"] + lp["b"])[:, None, :]
        c_m, h_m, layer_in = lstm_layer_pallas(
            layer_in, c_prev[m][:, None, :], hu, lp,
            d_model=d, res_conn=res_conn)
        c_last.append(c_m[:, 0, :])
        h_last.append(h_m[:, 0, :])

    logits = logits_pallas(layer_in.reshape(b * t, d), params["embed_t"], v)
    return (jnp.stack(c_last, 0), jnp.stack(h_last, 0),
            logits.reshape(b, t, v))


# -------------------------------- param init ---------------------------------

def init_params(key, n_layers, d_model, vocab_size):
    keys = jax.random.split(key, 1 + 5 * n_layers)
    embed = jax.random.normal(keys[0], (vocab_size, d_model), jnp.float32) * 0.05
    layers = []
    ki = 1
    for _ in range(n_layers):
        W = jax.random.normal(keys[ki + 0], (4 * d_model, d_model), jnp.float32) * 0.05
        U = jax.random.normal(keys[ki + 1], (4 * d_model, d_model), jnp.float32) * 0.05
        hp = jax.random.normal(keys[ki + 2], (d_model, d_model), jnp.float32) * 0.05
        f1 = jax.random.normal(keys[ki + 3], (4 * d_model, d_model), jnp.float32) * 0.05
        f2 = jax.random.normal(keys[ki + 4], (d_model, 4 * d_model), jnp.float32) * 0.05
        ki += 5
        layers.append(dict(
            Wt=W.T.astype(jnp.bfloat16),          # [D, 4D]  kernel gate matmul
            Ut=U.T,                               # [D, 4D]  f32, wrapper-side hu precompute
            b=jnp.zeros((1, 4 * d_model), jnp.float32),
            hpt=hp.T.astype(jnp.bfloat16),        # [D, D]
            f1t=f1.T.astype(jnp.bfloat16),        # [D, 4D]
            f2t=f2.T.astype(jnp.bfloat16),        # [4D, D]
            g1=jnp.ones((1, d_model), jnp.float32),
            b1=jnp.zeros((1, d_model), jnp.float32),
            g2=jnp.ones((1, d_model), jnp.float32),
            b2=jnp.zeros((1, d_model), jnp.float32),
        ))
    # embed^T precomputed once (bf16) and lane-padded so the logits kernel never
    # needs a full-vocab block (perf/compile cliff for vocabs like 50257).
    v_pad = _round_up(vocab_size, 128)
    embed_t = jnp.pad(embed.T.astype(jnp.bfloat16), ((0, 0), (0, v_pad - vocab_size)))
    return dict(embed=embed, embed_t=embed_t, layers=layers)


# ------------------------- pure-JAX reference (f32) ---------------------------

def _reference_forward(x_ids, c_prev, h_prev, params, *, res_conn=False):
    embed = params["embed"]
    d = embed.shape[1]
    eps = 1e-6
    x = embed[x_ids].astype(jnp.float32)
    c_last, h_last = [], []
    for m, lp in enumerate(params["layers"]):
        mu = x.mean(-1, keepdims=True)
        var = ((x - mu) ** 2).mean(-1, keepdims=True)
        xh = (x - mu) * jax.lax.rsqrt(var + eps)
        xn1 = xh * lp["g1"] + lp["b1"]
        xn2 = xh * lp["g2"] + lp["b2"]
        lin = (xn1 @ lp["Wt"].astype(jnp.float32)
               + (h_prev[m] @ lp["Ut"] + lp["b"])[:, None, :])
        i_g = jax.nn.sigmoid(lin[..., :d])
        f_g = jax.nn.sigmoid(lin[..., d:2 * d])
        o_g = jax.nn.sigmoid(lin[..., 2 * d:3 * d])
        c_t = jnp.tanh(lin[..., 3 * d:])
        c_n = f_g * c_prev[m][:, None, :] + i_g * c_t
        h_n = o_g * jnp.tanh(c_n)
        hid = jnp.maximum(xn2 @ lp["f1t"].astype(jnp.float32), 0.0)
        y = hid @ lp["f2t"].astype(jnp.float32) + h_n @ lp["hpt"].astype(jnp.float32)
        if res_conn:
            y = y + x
        c_last.append(c_n[:, -1, :])
        h_last.append(h_n[:, -1, :])
        x = y
    logits = jnp.einsum("btd,vd->btv", x, embed)
    return jnp.stack(c_last, 0), jnp.stack(h_last, 0), logits


# ----------------------------------- main -------------------------------------

if __name__ == "__main__":
    N_LAYERS, D_MODEL, VOCAB, SEQ, BATCH = 2, 32, 64, 8, 2

    key = jax.random.PRNGKey(0)
    kp, kx, kc, kh = jax.random.split(key, 4)

    params = init_params(kp, N_LAYERS, D_MODEL, VOCAB)
    x_ids = jax.random.randint(kx, (BATCH, SEQ), 0, VOCAB, dtype=jnp.int32)
    c_prev = jax.random.normal(kc, (N_LAYERS, BATCH, D_MODEL), jnp.float32) * 0.1
    h_prev = jax.random.normal(kh, (N_LAYERS, BATCH, D_MODEL), jnp.float32) * 0.1

    c_next, h_next, logits = lstm_forward(x_ids, c_prev, h_prev, params)
    jax.block_until_ready((c_next, h_next, logits))

    assert c_next.shape == (N_LAYERS, BATCH, D_MODEL)
    assert h_next.shape == (N_LAYERS, BATCH, D_MODEL)
    assert logits.shape == (BATCH, SEQ, VOCAB)

    # Correctness vs. f32 reference (kernel uses bf16 matmul inputs, f32 acc).
    rc, rh, rl = _reference_forward(x_ids, c_prev, h_prev, params)
    assert float(jnp.max(jnp.abs(c_next - rc))) < 3e-2
    assert float(jnp.max(jnp.abs(h_next - rh))) < 3e-2
    assert float(jnp.max(jnp.abs(logits - rl))) < 3e-2

    print("KERNEL_OK")
</pallas_src>

<mosaic_0001>
module attributes {stable_mosaic.version = 11 : i64} {
  func.func @lstm_layer_kernel(%arg0: i32, %arg1: i32, %arg2: memref<1x8x32xf32, #tpu.memory_space<vmem>>, %arg3: memref<1x1x32xf32, #tpu.memory_space<vmem>>, %arg4: memref<1x1x128xf32, #tpu.memory_space<vmem>>, %arg5: memref<32x128xbf16, #tpu.memory_space<vmem>>, %arg6: memref<32x32xbf16, #tpu.memory_space<vmem>>, %arg7: memref<32x128xbf16, #tpu.memory_space<vmem>>, %arg8: memref<128x32xbf16, #tpu.memory_space<vmem>>, %arg9: memref<1x32xf32, #tpu.memory_space<vmem>>, %arg10: memref<1x32xf32, #tpu.memory_space<vmem>>, %arg11: memref<1x32xf32, #tpu.memory_space<vmem>>, %arg12: memref<1x32xf32, #tpu.memory_space<vmem>>, %arg13: memref<1x1x32xf32, #tpu.memory_space<vmem>>, %arg14: memref<1x1x32xf32, #tpu.memory_space<vmem>>, %arg15: memref<1x8x32xf32, #tpu.memory_space<vmem>>) attributes {dimension_semantics = [#tpu.dimension_semantics<parallel>, #tpu.dimension_semantics<arbitrary>], iteration_bounds = array<i64: 2, 1>, scalar_prefetch = 0 : i64, scratch_operands = 0 : i64, tpu.core_type = #tpu.core_type<tc>, window_params = [{transform_indices = @transform_0, window_bounds = array<i64: 1, 8, 32>}, {transform_indices = @transform_1, window_bounds = array<i64: 1, 1, 32>}, {transform_indices = @transform_2, window_bounds = array<i64: 1, 1, 128>}, {pipeline_mode = #tpu.pipeline_mode<synchronous>, transform_indices = @transform_3, window_bounds = array<i64: 32, 128>}, {pipeline_mode = #tpu.pipeline_mode<synchronous>, transform_indices = @transform_4, window_bounds = array<i64: 32, 32>}, {pipeline_mode = #tpu.pipeline_mode<synchronous>, transform_indices = @transform_5, window_bounds = array<i64: 32, 128>}, {pipeline_mode = #tpu.pipeline_mode<synchronous>, transform_indices = @transform_6, window_bounds = array<i64: 128, 32>}, {pipeline_mode = #tpu.pipeline_mode<synchronous>, transform_indices = @transform_7, window_bounds = array<i64: 1, 32>}, {pipeline_mode = #tpu.pipeline_mode<synchronous>, transform_indices = @transform_8, window_bounds = array<i64: 1, 32>}, {pipeline_mode = #tpu.pipeline_mode<synchronous>, transform_indices = @transform_9, window_bounds = array<i64: 1, 32>}, {pipeline_mode = #tpu.pipeline_mode<synchronous>, transform_indices = @transform_10, window_bounds = array<i64: 1, 32>}, {transform_indices = @transform_11, window_bounds = array<i64: 1, 1, 32>}, {transform_indices = @transform_12, window_bounds = array<i64: 1, 1, 32>}, {transform_indices = @transform_13, window_bounds = array<i64: 1, 8, 32>}]} {
    %c0 = arith.constant 0 : index
    %c0_0 = arith.constant 0 : index
    %c0_1 = arith.constant 0 : index
    %0 = vector.load %arg2[%c0, %c0_0, %c0_1] : memref<1x8x32xf32, #tpu.memory_space<vmem>>, vector<1x8x32xf32>
    %1 = vector.shape_cast %0 : vector<1x8x32xf32> to vector<8x32xf32>
    %c0_2 = arith.constant 0 : index
    %c0_3 = arith.constant 0 : index
    %c0_4 = arith.constant 0 : index
    %2 = vector.load %arg3[%c0_2, %c0_3, %c0_4] : memref<1x1x32xf32, #tpu.memory_space<vmem>>, vector<1x1x32xf32>
    %3 = vector.shape_cast %2 : vector<1x1x32xf32> to vector<1x32xf32>
    %c0_5 = arith.constant 0 : index
    %c0_6 = arith.constant 0 : index
    %c0_7 = arith.constant 0 : index
    %4 = vector.load %arg4[%c0_5, %c0_6, %c0_7] : memref<1x1x128xf32, #tpu.memory_space<vmem>>, vector<1x1x128xf32>
    %5 = vector.shape_cast %4 : vector<1x1x128xf32> to vector<1x128xf32>
    %cst = arith.constant dense<0.000000e+00> : vector<8xf32>
    %6 = vector.multi_reduction <add>, %1, %cst [1] : vector<8x32xf32> to vector<8xf32>
    %7 = vector.shape_cast %6 : vector<8xf32> to vector<8x1xf32>
    %cst_8 = arith.constant 3.200000e+01 : f32
    %8 = vector.broadcast %cst_8 : f32 to vector<8x1xf32>
    %9 = arith.divf %7, %8 : vector<8x1xf32>
    %10 = vector.broadcast %9 : vector<8x1xf32> to vector<8x32xf32>
    %11 = arith.subf %1, %10 : vector<8x32xf32>
    %12 = arith.mulf %11, %11 : vector<8x32xf32>
    %cst_9 = arith.constant dense<0.000000e+00> : vector<8xf32>
    %13 = vector.multi_reduction <add>, %12, %cst_9 [1] : vector<8x32xf32> to vector<8xf32>
    %14 = vector.shape_cast %13 : vector<8xf32> to vector<8x1xf32>
    %cst_10 = arith.constant 3.200000e+01 : f32
    %15 = vector.broadcast %cst_10 : f32 to vector<8x1xf32>
    %16 = arith.divf %14, %15 : vector<8x1xf32>
    %17 = vector.broadcast %9 : vector<8x1xf32> to vector<8x32xf32>
    %18 = arith.subf %1, %17 : vector<8x32xf32>
    %cst_11 = arith.constant 9.99999997E-7 : f32
    %19 = vector.broadcast %cst_11 : f32 to vector<8x1xf32>
    %20 = arith.addf %16, %19 : vector<8x1xf32>
    %21 = math.rsqrt %20 : vector<8x1xf32>
    %22 = vector.broadcast %21 : vector<8x1xf32> to vector<8x32xf32>
    %23 = arith.mulf %18, %22 : vector<8x32xf32>
    %c0_12 = arith.constant 0 : index
    %c0_13 = arith.constant 0 : index
    %24 = vector.load %arg9[%c0_12, %c0_13] : memref<1x32xf32, #tpu.memory_space<vmem>>, vector<1x32xf32>
    %25 = vector.broadcast %24 : vector<1x32xf32> to vector<8x32xf32>
    %26 = arith.mulf %23, %25 : vector<8x32xf32>
    %c0_14 = arith.constant 0 : index
    %c0_15 = arith.constant 0 : index
    %27 = vector.load %arg10[%c0_14, %c0_15] : memref<1x32xf32, #tpu.memory_space<vmem>>, vector<1x32xf32>
    %28 = vector.broadcast %27 : vector<1x32xf32> to vector<8x32xf32>
    %29 = arith.addf %26, %28 : vector<8x32xf32>
    %c0_16 = arith.constant 0 : index
    %c0_17 = arith.constant 0 : index
    %30 = vector.load %arg11[%c0_16, %c0_17] : memref<1x32xf32, #tpu.memory_space<vmem>>, vector<1x32xf32>
    %31 = vector.broadcast %30 : vector<1x32xf32> to vector<8x32xf32>
    %32 = arith.mulf %23, %31 : vector<8x32xf32>
    %c0_18 = arith.constant 0 : index
    %c0_19 = arith.constant 0 : index
    %33 = vector.load %arg12[%c0_18, %c0_19] : memref<1x32xf32, #tpu.memory_space<vmem>>, vector<1x32xf32>
    %34 = vector.broadcast %33 : vector<1x32xf32> to vector<8x32xf32>
    %35 = arith.addf %32, %34 : vector<8x32xf32>
    %36 = arith.truncf %29 : vector<8x32xf32> to vector<8x32xbf16>
    %c0_20 = arith.constant 0 : index
    %c0_21 = arith.constant 0 : index
    %37 = vector.load %arg5[%c0_20, %c0_21] : memref<32x128xbf16, #tpu.memory_space<vmem>>, vector<32x128xbf16>
    %cst_22 = arith.constant dense<0.000000e+00> : vector<8x128xf32>
    %38 = tpu.matmul %36, %37, %cst_22 {dimension_numbers = #tpu.dot_dimension_numbers<[1], [0], [0], [1], [0, 0, 1, 1], [], []>} : vector<8x32xbf16>, vector<32x128xbf16>, vector<8x128xf32> -> vector<8x128xf32>
    %39 = vector.broadcast %5 : vector<1x128xf32> to vector<8x128xf32>
    %40 = arith.addf %38, %39 : vector<8x128xf32>
    %41 = vector.extract_strided_slice %40 {offsets = [0, 0], sizes = [8, 32], strides = [1, 1]} : vector<8x128xf32> to vector<8x32xf32>
    %42 = arith.negf %41 : vector<8x32xf32>
    %43 = math.exp %42 : vector<8x32xf32>
    %cst_23 = arith.constant 1.000000e+00 : f32
    %44 = vector.broadcast %cst_23 : f32 to vector<8x32xf32>
    %45 = arith.addf %44, %43 : vector<8x32xf32>
    %46 = arith.divf %44, %45 : vector<8x32xf32>
    %47 = vector.extract_strided_slice %40 {offsets = [0, 32], sizes = [8, 32], strides = [1, 1]} : vector<8x128xf32> to vector<8x32xf32>
    %48 = arith.negf %47 : vector<8x32xf32>
    %49 = math.exp %48 : vector<8x32xf32>
    %cst_24 = arith.constant 1.000000e+00 : f32
    %50 = vector.broadcast %cst_24 : f32 to vector<8x32xf32>
    %51 = arith.addf %50, %49 : vector<8x32xf32>
    %52 = arith.divf %50, %51 : vector<8x32xf32>
    %53 = vector.extract_strided_slice %40 {offsets = [0, 64], sizes = [8, 32], strides = [1, 1]} : vector<8x128xf32> to vector<8x32xf32>
    %54 = arith.negf %53 : vector<8x32xf32>
    %55 = math.exp %54 : vector<8x32xf32>
    %cst_25 = arith.constant 1.000000e+00 : f32
    %56 = vector.broadcast %cst_25 : f32 to vector<8x32xf32>
    %57 = arith.addf %56, %55 : vector<8x32xf32>
    %58 = arith.divf %56, %57 : vector<8x32xf32>
    %59 = vector.extract_strided_slice %40 {offsets = [0, 96], sizes = [8, 32], strides = [1, 1]} : vector<8x128xf32> to vector<8x32xf32>
    %60 = math.tanh %59 : vector<8x32xf32>
    %61 = vector.broadcast %3 : vector<1x32xf32> to vector<8x32xf32>
    %62 = arith.mulf %52, %61 : vector<8x32xf32>
    %63 = arith.mulf %46, %60 : vector<8x32xf32>
    %64 = arith.addf %62, %63 : vector<8x32xf32>
    %65 = math.tanh %64 : vector<8x32xf32>
    %66 = arith.mulf %58, %65 : vector<8x32xf32>
    %67 = arith.truncf %35 : vector<8x32xf32> to vector<8x32xbf16>
    %c0_26 = arith.constant 0 : index
    %c0_27 = arith.constant 0 : index
    %68 = vector.load %arg7[%c0_26, %c0_27] : memref<32x128xbf16, #tpu.memory_space<vmem>>, vector<32x128xbf16>
    %cst_28 = arith.constant dense<0.000000e+00> : vector<8x128xf32>
    %69 = tpu.matmul %67, %68, %cst_28 {dimension_numbers = #tpu.dot_dimension_numbers<[1], [0], [0], [1], [0, 0, 1, 1], [], []>} : vector<8x32xbf16>, vector<32x128xbf16>, vector<8x128xf32> -> vector<8x128xf32>
    %cst_29 = arith.constant 0.000000e+00 : f32
    %70 = vector.broadcast %cst_29 : f32 to vector<8x128xf32>
    %71 = arith.maximumf %69, %70 : vector<8x128xf32>
    %72 = arith.truncf %71 : vector<8x128xf32> to vector<8x128xbf16>
    %c0_30 = arith.constant 0 : index
    %c0_31 = arith.constant 0 : index
    %73 = vector.load %arg8[%c0_30, %c0_31] : memref<128x32xbf16, #tpu.memory_space<vmem>>, vector<128x32xbf16>
    %cst_32 = arith.constant dense<0.000000e+00> : vector<8x32xf32>
    %74 = tpu.matmul %72, %73, %cst_32 {dimension_numbers = #tpu.dot_dimension_numbers<[1], [0], [0], [1], [0, 0, 1, 1], [], []>} : vector<8x128xbf16>, vector<128x32xbf16>, vector<8x32xf32> -> vector<8x32xf32>
    %75 = arith.truncf %66 : vector<8x32xf32> to vector<8x32xbf16>
    %c0_33 = arith.constant 0 : index
    %c0_34 = arith.constant 0 : index
    %76 = vector.load %arg6[%c0_33, %c0_34] : memref<32x32xbf16, #tpu.memory_space<vmem>>, vector<32x32xbf16>
    %cst_35 = arith.constant dense<0.000000e+00> : vector<8x32xf32>
    %77 = tpu.matmul %75, %76, %cst_35 {dimension_numbers = #tpu.dot_dimension_numbers<[1], [0], [0], [1], [0, 0, 1, 1], [], []>} : vector<8x32xbf16>, vector<32x32xbf16>, vector<8x32xf32> -> vector<8x32xf32>
    %78 = arith.addf %74, %77 : vector<8x32xf32>
    %c0_36 = arith.constant 0 : index
    %c0_37 = arith.constant 0 : index
    %c0_38 = arith.constant 0 : index
    %79 = vector.load %arg15[%c0_36, %c0_37, %c0_38] : memref<1x8x32xf32, #tpu.memory_space<vmem>>, vector<1x8x32xf32>
    %80 = vector.shape_cast %79 : vector<1x8x32xf32> to vector<8x32xf32>
    %81 = vector.shape_cast %78 : vector<8x32xf32> to vector<1x8x32xf32>
    tpu.vector_store %arg15[%c0_36, %c0_37, %c0_38], %81 {strides = array<i32>} : memref<1x8x32xf32, #tpu.memory_space<vmem>>, vector<1x8x32xf32>,
    %c0_i32 = arith.constant 0 : i32
    %82 = arith.cmpi eq, %arg1, %c0_i32 : i32
    %83 = arith.extui %82 : i1 to i32
    %c0_i32_39 = arith.constant 0 : i32
    %84 = arith.cmpi ne, %83, %c0_i32_39 : i32
    scf.if %84 {
      %85 = vector.extract_strided_slice %64 {offsets = [7, 0], sizes = [1, 32], strides = [1, 1]} : vector<8x32xf32> to vector<1x32xf32>
      %c0_40 = arith.constant 0 : index
      %c0_41 = arith.constant 0 : index
      %c0_42 = arith.constant 0 : index
      %86 = vector.load %arg13[%c0_40, %c0_41, %c0_42] : memref<1x1x32xf32, #tpu.memory_space<vmem>>, vector<1x1x32xf32>
      %87 = vector.shape_cast %86 : vector<1x1x32xf32> to vector<1x32xf32>
      %88 = vector.shape_cast %85 : vector<1x32xf32> to vector<1x1x32xf32>
      tpu.vector_store %arg13[%c0_40, %c0_41, %c0_42], %88 {strides = array<i32>} : memref<1x1x32xf32, #tpu.memory_space<vmem>>, vector<1x1x32xf32>,
      %89 = vector.extract_strided_slice %66 {offsets = [7, 0], sizes = [1, 32], strides = [1, 1]} : vector<8x32xf32> to vector<1x32xf32>
      %c0_43 = arith.constant 0 : index
      %c0_44 = arith.constant 0 : index
      %c0_45 = arith.constant 0 : index
      %90 = vector.load %arg14[%c0_43, %c0_44, %c0_45] : memref<1x1x32xf32, #tpu.memory_space<vmem>>, vector<1x1x32xf32>
      %91 = vector.shape_cast %90 : vector<1x1x32xf32> to vector<1x32xf32>
      %92 = vector.shape_cast %89 : vector<1x32xf32> to vector<1x1x32xf32>
      tpu.vector_store %arg14[%c0_43, %c0_44, %c0_45], %92 {strides = array<i32>} : memref<1x1x32xf32, #tpu.memory_space<vmem>>, vector<1x1x32xf32>,
    } else {
    }
    return
  }
  func.func @transform_0(%arg0: i32, %arg1: i32) -> (i32, i32, i32) {
    %c0_i32 = arith.constant 0 : i32
    %c0_i32_0 = arith.constant 0 : i32
    return %arg0, %arg1, %c0_i32 : i32, i32, i32
  }
  func.func @transform_1(%arg0: i32, %arg1: i32) -> (i32, i32, i32) {
    %c0_i32 = arith.constant 0 : i32
    %c0_i32_0 = arith.constant 0 : i32
    %c0_i32_1 = arith.constant 0 : i32
    return %arg0, %c0_i32, %c0_i32_0 : i32, i32, i32
  }
  func.func @transform_2(%arg0: i32, %arg1: i32) -> (i32, i32, i32) {
    %c0_i32 = arith.constant 0 : i32
    %c0_i32_0 = arith.constant 0 : i32
    %c0_i32_1 = arith.constant 0 : i32
    return %arg0, %c0_i32, %c0_i32_0 : i32, i32, i32
  }
  func.func @transform_3(%arg0: i32, %arg1: i32) -> (i32, i32) {
    %c0_i32 = arith.constant 0 : i32
    %c0_i32_0 = arith.constant 0 : i32
    %c0_i32_1 = arith.constant 0 : i32
    return %c0_i32, %c0_i32_0 : i32, i32
  }
  func.func @transform_4(%arg0: i32, %arg1: i32) -> (i32, i32) {
    %c0_i32 = arith.constant 0 : i32
    %c0_i32_0 = arith.constant 0 : i32
    %c0_i32_1 = arith.constant 0 : i32
    return %c0_i32, %c0_i32_0 : i32, i32
  }
  func.func @transform_5(%arg0: i32, %arg1: i32) -> (i32, i32) {
    %c0_i32 = arith.constant 0 : i32
    %c0_i32_0 = arith.constant 0 : i32
    %c0_i32_1 = arith.constant 0 : i32
    return %c0_i32, %c0_i32_0 : i32, i32
  }
  func.func @transform_6(%arg0: i32, %arg1: i32) -> (i32, i32) {
    %c0_i32 = arith.constant 0 : i32
    %c0_i32_0 = arith.constant 0 : i32
    %c0_i32_1 = arith.constant 0 : i32
    return %c0_i32, %c0_i32_0 : i32, i32
  }
  func.func @transform_7(%arg0: i32, %arg1: i32) -> (i32, i32) {
    %c0_i32 = arith.constant 0 : i32
    %c0_i32_0 = arith.constant 0 : i32
    %c0_i32_1 = arith.constant 0 : i32
    return %c0_i32, %c0_i32_0 : i32, i32
  }
  func.func @transform_8(%arg0: i32, %arg1: i32) -> (i32, i32) {
    %c0_i32 = arith.constant 0 : i32
    %c0_i32_0 = arith.constant 0 : i32
    %c0_i32_1 = arith.constant 0 : i32
    return %c0_i32, %c0_i32_0 : i32, i32
  }
  func.func @transform_9(%arg0: i32, %arg1: i32) -> (i32, i32) {
    %c0_i32 = arith.constant 0 : i32
    %c0_i32_0 = arith.constant 0 : i32
    %c0_i32_1 = arith.constant 0 : i32
    return %c0_i32, %c0_i32_0 : i32, i32
  }
  func.func @transform_10(%arg0: i32, %arg1: i32) -> (i32, i32) {
    %c0_i32 = arith.constant 0 : i32
    %c0_i32_0 = arith.constant 0 : i32
    %c0_i32_1 = arith.constant 0 : i32
    return %c0_i32, %c0_i32_0 : i32, i32
  }
  func.func @transform_11(%arg0: i32, %arg1: i32) -> (i32, i32, i32) {
    %c0_i32 = arith.constant 0 : i32
    %c0_i32_0 = arith.constant 0 : i32
    %c0_i32_1 = arith.constant 0 : i32
    return %arg0, %c0_i32, %c0_i32_0 : i32, i32, i32
  }
  func.func @transform_12(%arg0: i32, %arg1: i32) -> (i32, i32, i32) {
    %c0_i32 = arith.constant 0 : i32
    %c0_i32_0 = arith.constant 0 : i32
    %c0_i32_1 = arith.constant 0 : i32
    return %arg0, %c0_i32, %c0_i32_0 : i32, i32, i32
  }
  func.func @transform_13(%arg0: i32, %arg1: i32) -> (i32, i32, i32) {
    %c0_i32 = arith.constant 0 : i32
    %c0_i32_0 = arith.constant 0 : i32
    return %arg0, %arg1, %c0_i32 : i32, i32, i32
  }
}

</mosaic_0001>

<llo_original>
// kernel: tpu_custom_call.1
$region0: #{tpu_custom_call.1}
  #allocation0 [shape = 'u32[]', space=smem, size = 0x4, offset = 0x4, fixed_abs, tag = 'smem constant byte address 0x4 - core index']
  #allocation1 [shape = 'u32[72,128]{1,0:T(1,128)}', space=vmem, size = 0x9000, scoped, tag = 'internal scratch']
  %s0 = inlined_call_operand.vmem [shape: f32[2,8,32], index: 0, kind: input, shape index: {}]
  %s1 = inlined_call_operand.vmem [shape: f32[2,1,32], index: 1, kind: input, shape index: {}]
  %s2 = inlined_call_operand.vmem [shape: f32[2,1,128], index: 2, kind: input, shape index: {}]
  %s3 = inlined_call_operand.vmem [shape: bf16[32,128], index: 3, kind: input, shape index: {}]
  %s4 = inlined_call_operand.vmem [shape: bf16[32,32], index: 4, kind: input, shape index: {}]
  %s5 = inlined_call_operand.vmem [shape: bf16[32,128], index: 5, kind: input, shape index: {}]
  %s6 = inlined_call_operand.vmem [shape: bf16[128,32], index: 6, kind: input, shape index: {}]
  %s7 = inlined_call_operand.vmem [shape: f32[1,32], index: 7, kind: input, shape index: {}]
  %s8 = inlined_call_operand.vmem [shape: f32[1,32], index: 8, kind: input, shape index: {}]
  %s9 = inlined_call_operand.vmem [shape: f32[1,32], index: 9, kind: input, shape index: {}]
  %s10 = inlined_call_operand.vmem [shape: f32[1,32], index: 10, kind: input, shape index: {}]
  %s11 = inlined_call_operand.hbm [shape: f32[2,1,32], index: 11, kind: output, shape index: {0}]
  %s12 = inlined_call_operand.hbm [shape: f32[2,1,32], index: 12, kind: output, shape index: {1}]
  %s13 = inlined_call_operand.hbm [shape: f32[2,8,32], index: 13, kind: output, shape index: {2}]
  %14 = xla_tuple %s11, %s12, %s13
  %s15 = sld [smem:[#allocation0]]
  $region97: #{tpu_custom_call.1} parent=0
    _
  %s17 = ssub.s32 1, %s15
  %s18 = scalar_select 0, %s17, %s15
  $region1: #{tpu_custom_call.1} parent=0
    #allocation2 [shape = 'u8[1024]{0}', space=vmem, size = 0x400, scoped, tag = 'output window, operand 0']
    #allocation3 [shape = 's32[2]{0}', space=sflag, size = 0x8, scoped, tag = 'scoped memory for tpu_custom_call.1']
    #allocation4 [shape = 'u8[1024]{0}', space=vmem, size = 0x400, scoped, tag = 'output window, operand 1']
    #allocation5 [shape = 's32[2]{0}', space=sflag, size = 0x8, scoped, tag = 'scoped memory for tpu_custom_call.1']
    #allocation6 [shape = 'u8[8192]{0}', space=vmem, size = 0x2000, scoped, tag = 'output window, operand 2']
    %19 = vsyncpa [#allocation3], 0
    %s20 = scalar_lea.sflag [#allocation3], 1
    %21 = vsyncpa %s20, 0
    %22 = vsyncpa [#allocation5], 0
    %s23 = scalar_lea.sflag [#allocation5], 1
    %24 = vsyncpa %s23, 0
    loop: start=0, step=1, limit=4
    $region2: #{tpu_custom_call.1} parent=1 // loop_pre_header
      _
    $region3: #{tpu_custom_call.1} parent=1 // loop_header
      %s26 = sphi 0, %s30
      %p27 = scmp.ge.s32.totalorder %s26, 4
      %s33 = sphi 0, %s45
      %s34 = sphi 0, %s41
      %s35 = sphi 0, %s33
      %s36 = sphi 0, %s34
      %s37 = sphi 0, %s35
      %s38 = sphi 0, %s36
      %s50 = sphi 0, %s52
      %s53 = sphi 0, %s50
      %s54 = sphi 0, %s53
      %s70 = sphi 0, %s54
      %s76 = sphi 0, %s78
      %s79 = sphi 0, %s76
      %s80 = sphi 0, %s79
      %s96 = sphi 0, %s80
      %s102 = sphi 0, %s104
      %s105 = sphi 0, %s102
      %s106 = sphi 0, %s105
      %s122 = sphi 0, %s106
      %s126 = sphi 0, %s126
      %s128 = sphi 0, %s126
      %s129 = sphi 0, %s128
      %s143 = sphi 0, %s129
      %s147 = sphi 0, %s147
      %s149 = sphi 0, %s147
      %s150 = sphi 0, %s149
      %s164 = sphi 0, %s150
      %s168 = sphi 0, %s168
      %s170 = sphi 0, %s168
      %s171 = sphi 0, %s170
      %s185 = sphi 0, %s171
      %s189 = sphi 0, %s189
      %s191 = sphi 0, %s189
      %s192 = sphi 0, %s191
      %s206 = sphi 0, %s192
      %s210 = sphi 0, %s210
      %s212 = sphi 0, %s210
      %s213 = sphi 0, %s212
      %s227 = sphi 0, %s213
      %s231 = sphi 0, %s231
      %s233 = sphi 0, %s231
      %s234 = sphi 0, %s233
      %s248 = sphi 0, %s234
      %s252 = sphi 0, %s252
      %s254 = sphi 0, %s252
      %s255 = sphi 0, %s254
      %s269 = sphi 0, %s255
      %s273 = sphi 0, %s273
      %s275 = sphi 0, %s273
      %s276 = sphi 0, %s275
      %s290 = sphi 0, %s276
      %s296 = sphi 0, %s298
      %s299 = sphi 0, %s296
      %s300 = sphi 0, %s299
      %s316 = sphi 0, %s300
      %s322 = sphi 0, %s324
      %s325 = sphi 0, %s322
      %s326 = sphi 0, %s325
      %s342 = sphi 0, %s326
      %s350 = sphi 0, %s352
      %s353 = sphi 0, %s350
      %s354 = sphi 0, %s353
      %s370 = sphi 0, %s354
    $region4: #{tpu_custom_call.1} parent=1 // loop_header_branch
      %29 = sbr.rel (%p27) target = $region8
    $region5: #{tpu_custom_call.1} parent=1 // loop_body
      %s31 = ssub.s32 %s26, 1
      %s32 = ssub.s32 %s26, 2
      %s39 = sadd.s32 1, %s34
      %p40 = scmp.ge.s32.totalorder %s39, 1
      %s41 = scalar_select %p40, 0, %s39
      %s42 = sadd.s32 1, %s33
      %s43 = scalar_select %p40, %s42, %s33
      %p44 = scmp.ge.s32.totalorder %s43, 2
      %s45 = scalar_select %p44, 0, %s43
      %s46 = ssub.s32 %s33, %s45
      %s47 = ssub.s32 %s34, %s41
      %s48 = sor.u32 %s46, %s47
      %p49 = scmp.eq.s32.totalorder %s48, 0
      %s51 = sadd.s32 %s50, 1
      %s52 = scalar_select %p49, %s50, %s51
      %p55 = pneg %p49
      %p56 = scmp.eq.s32.totalorder %s26, 1
      %p57 = por %p55, %p56
      %p58 = scmp.ne.s32.totalorder %s50, %s53
      %p59 = scmp.eq.s32.totalorder %s26, 0
      %p60 = por %p58, %p59
      %p61 = scmp.ne.s32.totalorder %s50, %s53
      %p62 = scmp.eq.s32.totalorder %s31, 1
      %p63 = por %p61, %p62
      %p64 = scmp.ne.s32.totalorder %s53, %s54
      %p65 = scmp.eq.s32.totalorder %s31, 0
      %p66 = por %p64, %p65
      %p67 = scmp.ne.s32.totalorder %s53, %s54
      %p68 = scmp.eq.s32.totalorder %s32, 1
      %p69 = por %p67, %p68
      %p71 = scmp.ne.s32.totalorder %s54, %s70
      %p72 = scmp.eq.s32.totalorder %s32, 0
      %p73 = por %p71, %p72
      %s74 = ssub.s32 %s33, %s45
      %p75 = scmp.eq.s32.totalorder %s74, 0
      %s77 = sadd.s32 %s76, 1
      %s78 = scalar_select %p75, %s76, %s77
      %p81 = pneg %p75
      %p82 = scmp.eq.s32.totalorder %s26, 1
      %p83 = por %p81, %p82
      %p84 = scmp.ne.s32.totalorder %s76, %s79
      %p85 = scmp.eq.s32.totalorder %s26, 0
      %p86 = por %p84, %p85
      %p87 = scmp.ne.s32.totalorder %s76, %s79
      %p88 = scmp.eq.s32.totalorder %s31, 1
      %p89 = por %p87, %p88
      %p90 = scmp.ne.s32.totalorder %s79, %s80
      %p91 = scmp.eq.s32.totalorder %s31, 0
      %p92 = por %p90, %p91
      %p93 = scmp.ne.s32.totalorder %s79, %s80
      %p94 = scmp.eq.s32.totalorder %s32, 1
      %p95 = por %p93, %p94
      %p97 = scmp.ne.s32.totalorder %s80, %s96
      %p98 = scmp.eq.s32.totalorder %s32, 0
      %p99 = por %p97, %p98
      %s100 = ssub.s32 %s33, %s45
      %p101 = scmp.eq.s32.totalorder %s100, 0
      %s103 = sadd.s32 %s102, 1
      %s104 = scalar_select %p101, %s102, %s103
      %p107 = pneg %p101
      %p108 = scmp.eq.s32.totalorder %s26, 1
      %p109 = por %p107, %p108
      %p110 = scmp.ne.s32.totalorder %s102, %s105
      %p111 = scmp.eq.s32.totalorder %s26, 0
      %p112 = por %p110, %p111
      %p113 = scmp.ne.s32.totalorder %s102, %s105
      %p114 = scmp.eq.s32.totalorder %s31, 1
      %p115 = por %p113, %p114
      %p116 = scmp.ne.s32.totalorder %s105, %s106
      %p117 = scmp.eq.s32.totalorder %s31, 0
      %p118 = por %p116, %p117
      %p119 = scmp.ne.s32.totalorder %s105, %s106
      %p120 = scmp.eq.s32.totalorder %s32, 1
      %p121 = por %p119, %p120
      %p123 = scmp.ne.s32.totalorder %s106, %s122
      %p124 = scmp.eq.s32.totalorder %s32, 0
      %p125 = por %p123, %p124
      %s127 = sadd.s32 %s126, 1
      %p130 = scmp.eq.s32.totalorder %s26, 1
      %p131 = scmp.ne.s32.totalorder %s126, %s128
      %p132 = scmp.eq.s32.totalorder %s26, 0
      %p133 = por %p131, %p132
      %p134 = scmp.ne.s32.totalorder %s126, %s128
      %p135 = scmp.eq.s32.totalorder %s31, 1
      %p136 = por %p134, %p135
      %p137 = scmp.ne.s32.totalorder %s128, %s129
      %p138 = scmp.eq.s32.totalorder %s31, 0
      %p139 = por %p137, %p138
      %p140 = scmp.ne.s32.totalorder %s128, %s129
      %p141 = scmp.eq.s32.totalorder %s32, 1
      %p142 = por %p140, %p141
      %p144 = scmp.ne.s32.totalorder %s129, %s143
      %p145 = scmp.eq.s32.totalorder %s32, 0
      %p146 = por %p144, %p145
      %s148 = sadd.s32 %s147, 1
      %p151 = scmp.eq.s32.totalorder %s26, 1
      %p152 = scmp.ne.s32.totalorder %s147, %s149
      %p153 = scmp.eq.s32.totalorder %s26, 0
      %p154 = por %p152, %p153
      %p155 = scmp.ne.s32.totalorder %s147, %s149
      %p156 = scmp.eq.s32.totalorder %s31, 1
      %p157 = por %p155, %p156
      %p158 = scmp.ne.s32.totalorder %s149, %s150
      %p159 = scmp.eq.s32.totalorder %s31, 0
      %p160 = por %p158, %p159
      %p161 = scmp.ne.s32.totalorder %s149, %s150
      %p162 = scmp.eq.s32.totalorder %s32, 1
      %p163 = por %p161, %p162
      %p165 = scmp.ne.s32.totalorder %s150, %s164
      %p166 = scmp.eq.s32.totalorder %s32, 0
      %p167 = por %p165, %p166
      %s169 = sadd.s32 %s168, 1
      %p172 = scmp.eq.s32.totalorder %s26, 1
      %p173 = scmp.ne.s32.totalorder %s168, %s170
      %p174 = scmp.eq.s32.totalorder %s26, 0
      %p175 = por %p173, %p174
      %p176 = scmp.ne.s32.totalorder %s168, %s170
      %p177 = scmp.eq.s32.totalorder %s31, 1
      %p178 = por %p176, %p177
      %p179 = scmp.ne.s32.totalorder %s170, %s171
      %p180 = scmp.eq.s32.totalorder %s31, 0
      %p181 = por %p179, %p180
      %p182 = scmp.ne.s32.totalorder %s170, %s171
      %p183 = scmp.eq.s32.totalorder %s32, 1
      %p184 = por %p182, %p183
      %p186 = scmp.ne.s32.totalorder %s171, %s185
      %p187 = scmp.eq.s32.totalorder %s32, 0
      %p188 = por %p186, %p187
      %s190 = sadd.s32 %s189, 1
      %p193 = scmp.eq.s32.totalorder %s26, 1
      %p194 = scmp.ne.s32.totalorder %s189, %s191
      %p195 = scmp.eq.s32.totalorder %s26, 0
      %p196 = por %p194, %p195
      %p197 = scmp.ne.s32.totalorder %s189, %s191
      %p198 = scmp.eq.s32.totalorder %s31, 1
      %p199 = por %p197, %p198
      %p200 = scmp.ne.s32.totalorder %s191, %s192
      %p201 = scmp.eq.s32.totalorder %s31, 0
      %p202 = por %p200, %p201
      %p203 = scmp.ne.s32.totalorder %s191, %s192
      %p204 = scmp.eq.s32.totalorder %s32, 1
      %p205 = por %p203, %p204
      %p207 = scmp.ne.s32.totalorder %s192, %s206
      %p208 = scmp.eq.s32.totalorder %s32, 0
      %p209 = por %p207, %p208
      %s211 = sadd.s32 %s210, 1
      %p214 = scmp.eq.s32.totalorder %s26, 1
      %p215 = scmp.ne.s32.totalorder %s210, %s212
      %p216 = scmp.eq.s32.totalorder %s26, 0
      %p217 = por %p215, %p216
      %p218 = scmp.ne.s32.totalorder %s210, %s212
      %p219 = scmp.eq.s32.totalorder %s31, 1
      %p220 = por %p218, %p219
      %p221 = scmp.ne.s32.totalorder %s212, %s213
      %p222 = scmp.eq.s32.totalorder %s31, 0
      %p223 = por %p221, %p222
      %p224 = scmp.ne.s32.totalorder %s212, %s213
      %p225 = scmp.eq.s32.totalorder %s32, 1
      %p226 = por %p224, %p225
      %p228 = scmp.ne.s32.totalorder %s213, %s227
      %p229 = scmp.eq.s32.totalorder %s32, 0
      %p230 = por %p228, %p229
      %s232 = sadd.s32 %s231, 1
      %p235 = scmp.eq.s32.totalorder %s26, 1
      %p236 = scmp.ne.s32.totalorder %s231, %s233
      %p237 = scmp.eq.s32.totalorder %s26, 0
      %p238 = por %p236, %p237
      %p239 = scmp.ne.s32.totalorder %s231, %s233
      %p240 = scmp.eq.s32.totalorder %s31, 1
      %p241 = por %p239, %p240
      %p242 = scmp.ne.s32.totalorder %s233, %s234
      %p243 = scmp.eq.s32.totalorder %s31, 0
      %p244 = por %p242, %p243
      %p245 = scmp.ne.s32.totalorder %s233, %s234
      %p246 = scmp.eq.s32.totalorder %s32, 1
      %p247 = por %p245, %p246
      %p249 = scmp.ne.s32.totalorder %s234, %s248
      %p250 = scmp.eq.s32.totalorder %s32, 0
      %p251 = por %p249, %p250
      %s253 = sadd.s32 %s252, 1
      %p256 = scmp.eq.s32.totalorder %s26, 1
      %p257 = scmp.ne.s32.totalorder %s252, %s254
      %p258 = scmp.eq.s32.totalorder %s26, 0
      %p259 = por %p257, %p258
      %p260 = scmp.ne.s32.totalorder %s252, %s254
      %p261 = scmp.eq.s32.totalorder %s31, 1
      %p262 = por %p260, %p261
      %p263 = scmp.ne.s32.totalorder %s254, %s255
      %p264 = scmp.eq.s32.totalorder %s31, 0
      %p265 = por %p263, %p264
      %p266 = scmp.ne.s32.totalorder %s254, %s255
      %p267 = scmp.eq.s32.totalorder %s32, 1
      %p268 = por %p266, %p267
      %p270 = scmp.ne.s32.totalorder %s255, %s269
      %p271 = scmp.eq.s32.totalorder %s32, 0
      %p272 = por %p270, %p271
      %s274 = sadd.s32 %s273, 1
      %p277 = scmp.eq.s32.totalorder %s26, 1
      %p278 = scmp.ne.s32.totalorder %s273, %s275
      %p279 = scmp.eq.s32.totalorder %s26, 0
      %p280 = por %p278, %p279
      %p281 = scmp.ne.s32.totalorder %s273, %s275
      %p282 = scmp.eq.s32.totalorder %s31, 1
      %p283 = por %p281, %p282
      %p284 = scmp.ne.s32.totalorder %s275, %s276
      %p285 = scmp.eq.s32.totalorder %s31, 0
      %p286 = por %p284, %p285
      %p287 = scmp.ne.s32.totalorder %s275, %s276
      %p288 = scmp.eq.s32.totalorder %s32, 1
      %p289 = por %p287, %p288
      %p291 = scmp.ne.s32.totalorder %s276, %s290
      %p292 = scmp.eq.s32.totalorder %s32, 0
      %p293 = por %p291, %p292
      %s294 = ssub.s32 %s33, %s45
      %p295 = scmp.eq.s32.totalorder %s294, 0
      %s297 = sadd.s32 %s296, 1
      %s298 = scalar_select %p295, %s296, %s297
      %p301 = pneg %p295
      %p302 = scmp.eq.s32.totalorder %s26, 1
      %p303 = por %p301, %p302
      %p304 = scmp.ne.s32.totalorder %s296, %s299
      %p305 = scmp.eq.s32.totalorder %s26, 0
      %p306 = por %p304, %p305
      %p307 = scmp.ne.s32.totalorder %s296, %s299
      %p308 = scmp.eq.s32.totalorder %s31, 1
      %p309 = por %p307, %p308
      %p310 = scmp.ne.s32.totalorder %s299, %s300
      %p311 = scmp.eq.s32.totalorder %s31, 0
      %p312 = por %p310, %p311
      %p313 = scmp.ne.s32.totalorder %s299, %s300
      %p314 = scmp.eq.s32.totalorder %s32, 1
      %p315 = por %p313, %p314
      %p317 = scmp.ne.s32.totalorder %s300, %s316
      %p318 = scmp.eq.s32.totalorder %s32, 0
      %p319 = por %p317, %p318
      %s320 = ssub.s32 %s33, %s45
      %p321 = scmp.eq.s32.totalorder %s320, 0
      %s323 = sadd.s32 %s322, 1
      %s324 = scalar_select %p321, %s322, %s323
      %p327 = pneg %p321
      %p328 = scmp.eq.s32.totalorder %s26, 1
      %p329 = por %p327, %p328
      %p330 = scmp.ne.s32.totalorder %s322, %s325
      %p331 = scmp.eq.s32.totalorder %s26, 0
      %p332 = por %p330, %p331
      %p333 = scmp.ne.s32.totalorder %s322, %s325
      %p334 = scmp.eq.s32.totalorder %s31, 1
      %p335 = por %p333, %p334
      %p336 = scmp.ne.s32.totalorder %s325, %s326
      %p337 = scmp.eq.s32.totalorder %s31, 0
      %p338 = por %p336, %p337
      %p339 = scmp.ne.s32.totalorder %s325, %s326
      %p340 = scmp.eq.s32.totalorder %s32, 1
      %p341 = por %p339, %p340
      %p343 = scmp.ne.s32.totalorder %s326, %s342
      %p344 = scmp.eq.s32.totalorder %s32, 0
      %p345 = por %p343, %p344
      %s346 = ssub.s32 %s33, %s45
      %s347 = ssub.s32 %s34, %s41
      %s348 = sor.u32 %s346, %s347
      %p349 = scmp.eq.s32.totalorder %s348, 0
      %s351 = sadd.s32 %s350, 1
      %s352 = scalar_select %p349, %s350, %s351
      %p355 = pneg %p349
      %p356 = scmp.eq.s32.totalorder %s26, 1
      %p357 = por %p355, %p356
      %p358 = scmp.ne.s32.totalorder %s350, %s353
      %p359 = scmp.eq.s32.totalorder %s26, 0
      %p360 = por %p358, %p359
      %p361 = scmp.ne.s32.totalorder %s350, %s353
      %p362 = scmp.eq.s32.totalorder %s31, 1
      %p363 = por %p361, %p362
      %p364 = scmp.ne.s32.totalorder %s353, %s354
      %p365 = scmp.eq.s32.totalorder %s31, 0
      %p366 = por %p364, %p365
      %p367 = scmp.ne.s32.totalorder %s353, %s354
      %p368 = scmp.eq.s32.totalorder %s32, 1
      %p369 = por %p367, %p368
      %p371 = scmp.ne.s32.totalorder %s354, %s370
      %p372 = scmp.eq.s32.totalorder %s32, 0
      %p373 = por %p371, %p372
      %p374 = scmp.le.s32.totalorder 1, %s26
      %p375 = scmp.lt.s32.totalorder %s26, 3
      %p376 = pnand %p374, %p375
      %p377 = pneg %p376
      // Predicated region
      $region9: #{tpu_custom_call.1} parent=5 // pred_check
        _
      $region10: #{tpu_custom_call.1} parent=5 // pred_check_branch
        %379 = sbr.rel (%p376) target = $region12
      $region11: #{tpu_custom_call.1} parent=5 // pred_region
        %s380 = ssub.s32 %s26, 1
        // Predicated region
        $region13: #{tpu_custom_call.1} parent=11 // pred_check
          %p381 = pneg %p139
        $region14: #{tpu_custom_call.1} parent=11 // pred_check_branch
          %383 = sbr.rel (%p381) target = $region16
        $region15: #{tpu_custom_call.1} parent=11 // pred_region
          _
        $region16: #{tpu_custom_call.1} parent=11 // pred_fallthru
          _
        // Predicated region
        $region17: #{tpu_custom_call.1} parent=11 // pred_check
          %p384 = pneg %p160
        $region18: #{tpu_custom_call.1} parent=11 // pred_check_branch
          %386 = sbr.rel (%p384) target = $region20
        $region19: #{tpu_custom_call.1} parent=11 // pred_region
          _
        $region20: #{tpu_custom_call.1} parent=11 // pred_fallthru
          _
        // Predicated region
        $region21: #{tpu_custom_call.1} parent=11 // pred_check
          %p387 = pneg %p181
        $region22: #{tpu_custom_call.1} parent=11 // pred_check_branch
          %389 = sbr.rel (%p387) target = $region24
        $region23: #{tpu_custom_call.1} parent=11 // pred_region
          _
        $region24: #{tpu_custom_call.1} parent=11 // pred_fallthru
          _
        // Predicated region
        $region25: #{tpu_custom_call.1} parent=11 // pred_check
          %p390 = pneg %p202
        $region26: #{tpu_custom_call.1} parent=11 // pred_check_branch
          %392 = sbr.rel (%p390) target = $region28
        $region27: #{tpu_custom_call.1} parent=11 // pred_region
          _
        $region28: #{tpu_custom_call.1} parent=11 // pred_fallthru
          _
        // Predicated region
        $region29: #{tpu_custom_call.1} parent=11 // pred_check
          %p393 = pneg %p223
        $region30: #{tpu_custom_call.1} parent=11 // pred_check_branch
          %395 = sbr.rel (%p393) target = $region32
        $region31: #{tpu_custom_call.1} parent=11 // pred_region
          _
        $region32: #{tpu_custom_call.1} parent=11 // pred_fallthru
          _
        // Predicated region
        $region33: #{tpu_custom_call.1} parent=11 // pred_check
          %p396 = pneg %p244
        $region34: #{tpu_custom_call.1} parent=11 // pred_check_branch
          %398 = sbr.rel (%p396) target = $region36
        $region35: #{tpu_custom_call.1} parent=11 // pred_region
          _
        $region36: #{tpu_custom_call.1} parent=11 // pred_fallthru
          _
        // Predicated region
        $region37: #{tpu_custom_call.1} parent=11 // pred_check
          %p399 = pneg %p265
        $region38: #{tpu_custom_call.1} parent=11 // pred_check_branch
          %401 = sbr.rel (%p399) target = $region40
        $region39: #{tpu_custom_call.1} parent=11 // pred_region
          _
        $region40: #{tpu_custom_call.1} parent=11 // pred_fallthru
          _
        // Predicated region
        $region41: #{tpu_custom_call.1} parent=11 // pred_check
          %p402 = pneg %p286
        $region42: #{tpu_custom_call.1} parent=11 // pred_check_branch
          %404 = sbr.rel (%p402) target = $region44
        $region43: #{tpu_custom_call.1} parent=11 // pred_region
          _
        $region44: #{tpu_custom_call.1} parent=11 // pred_fallthru
          _
      $region12: #{tpu_custom_call.1} parent=5 // pred_fallthru
        _
      %p405 = scmp.lt.s32.totalorder %s26, 2
      // Predicated region
      $region45: #{tpu_custom_call.1} parent=5 // pred_check
        %p406 = pneg %p405
      $region46: #{tpu_custom_call.1} parent=5 // pred_check_branch
        %408 = sbr.rel (%p406) target = $region48
      $region47: #{tpu_custom_call.1} parent=5 // pred_region
        // Predicated region
        $region49: #{tpu_custom_call.1} parent=47 // pred_check
          %p409 = pneg %p60
        $region50: #{tpu_custom_call.1} parent=47 // pred_check_branch
          %411 = sbr.rel (%p409) target = $region52
        $region51: #{tpu_custom_call.1} parent=47 // pred_region
          %p412 = scmp.lt.s32.totalorder %s33, 1
          %s413 = scalar_select %p412, %s33, 1
          %p414 = scmp.lt.s32.totalorder %s34, 0
          %s415 = scalar_select %p414, %s34, 0
          %s416 = sadd.s32 %s415, %s413
          %s417 = smul.addr %s416, 8
          %s418 = scalar_lea.vmem %s0, %s417
        $region52: #{tpu_custom_call.1} parent=47 // pred_fallthru
          _
        // Predicated region
        $region53: #{tpu_custom_call.1} parent=47 // pred_check
          %p419 = pneg %p86
        $region54: #{tpu_custom_call.1} parent=47 // pred_check_branch
          %421 = sbr.rel (%p419) target = $region56
        $region55: #{tpu_custom_call.1} parent=47 // pred_region
          %p422 = scmp.lt.s32.totalorder %s33, 1
          %s423 = scalar_select %p422, %s33, 1
          %s424 = scalar_lea.vmem %s1, %s423
        $region56: #{tpu_custom_call.1} parent=47 // pred_fallthru
          _
        // Predicated region
        $region57: #{tpu_custom_call.1} parent=47 // pred_check
          %p425 = pneg %p112
        $region58: #{tpu_custom_call.1} parent=47 // pred_check_branch
          %427 = sbr.rel (%p425) target = $region60
        $region59: #{tpu_custom_call.1} parent=47 // pred_region
          %p428 = scmp.lt.s32.totalorder %s33, 1
          %s429 = scalar_select %p428, %s33, 1
          %s430 = scalar_lea.vmem %s2, %s429
        $region60: #{tpu_custom_call.1} parent=47 // pred_fallthru
          _
      $region48: #{tpu_custom_call.1} parent=5 // pred_fallthru
        _
      %p431 = scmp.le.s32.totalorder 1, %s26
      %p432 = scmp.lt.s32.totalorder %s26, 3
      %p433 = pnand %p431, %p432
      %p434 = pneg %p433
      // Predicated region
      $region61: #{tpu_custom_call.1} parent=5 // pred_check
        _
      $region62: #{tpu_custom_call.1} parent=5 // pred_check_branch
        %436 = sbr.rel (%p433) target = $region64
      $region63: #{tpu_custom_call.1} parent=5 // pred_region
        %s437 = ssub.s32 %s26, 1
        %p438 = scmp.lt.s32.totalorder %s35, 1
        %s439 = scalar_select %p438, %s35, 1
        %p440 = scmp.lt.s32.totalorder %s36, 0
        %s441 = scalar_select %p440, %s36, 0
        %s442 = sadd.s32 %s441, %s439
        %s443 = smul.addr %s442, 8
        %s444 = scalar_lea.vmem %s0, %s443
        %p445 = pneg %p66
        %p446 = pneg %p63
        %p447 = scmp.lt.s32.totalorder %s35, 1
        %s448 = scalar_select %p447, %s35, 1
        %s449 = scalar_lea.vmem %s1, %s448
        %p450 = pneg %p92
        %p451 = pneg %p89
        %p452 = scmp.lt.s32.totalorder %s35, 1
        %s453 = scalar_select %p452, %s35, 1
        %s454 = scalar_lea.vmem %s2, %s453
        %p455 = pneg %p118
        %p456 = pneg %p115
        %p457 = pneg %p139
        %p458 = pneg %p136
        %p459 = pneg %p160
        %p460 = pneg %p157
        %p461 = pneg %p181
        %p462 = pneg %p178
        %p463 = pneg %p202
        %p464 = pneg %p199
        %p465 = pneg %p223
        %p466 = pneg %p220
        %p467 = pneg %p244
        %p468 = pneg %p241
        %p469 = pneg %p265
        %p470 = pneg %p262
        %p471 = pneg %p286
        %p472 = pneg %p283
        %p473 = pneg %p312
        %p474 = pneg %p309
        %s475 = sand.u32 %s299, 1
        %s476 = scalar_lea.sflag [#allocation3], %s475
        %s477 = sand.u32 %s299, 1
        %s478 = scalar_lea.vmem [#allocation2], %s477
        %p479 = pneg %p338
        %p480 = pneg %p335
        %s481 = sand.u32 %s31, 1
        %s482 = scalar_lea.sflag [#allocation5], %s481
        %s483 = sand.u32 %s325, 1
        %s484 = scalar_lea.vmem [#allocation4], %s483
        %p485 = pneg %p366
        %p486 = pneg %p363
        %s487 = sand.u32 %s31, 1
        %s488 = scalar_lea.sflag [#allocation5], %s487
        %s489 = sand.u32 %s353, 1
        %s490 = smul.addr %s489, 8
        %s491 = scalar_lea.vmem [#allocation6], %s490
        %p492 = scmp.lt.s32.totalorder %s35, 1
        %s493 = scalar_select %p492, %s35, 1
        %p494 = scmp.lt.s32.totalorder %s36, 0
        %s495 = scalar_select %p494, %s36, 0
        %s496 = sadd.s32 %s495, %s493
        %s497 = smul.addr %s496, 8
        %s498 = scalar_lea.vmem %s0, %s497
        %p499 = scmp.lt.s32.totalorder %s35, 1
        %s500 = scalar_select %p499, %s35, 1
        %s501 = scalar_lea.vmem %s1, %s500
        %p502 = scmp.lt.s32.totalorder %s35, 1
        %s503 = scalar_select %p502, %s35, 1
        %s504 = scalar_lea.vmem %s2, %s503
        %v506 = vld [vmem:[%s498] sm:$0xff]
        %v507 = vld [vmem:[%s501] sm:$0x1]
        %v508 = vld [vmem:[%s504] sm:$0x1]
        %vm509 = vcmask 261120
        %v510 = vsel %vm509, %v506, 0.0
        %511 = vadd.xlane.f32.xlu0 %v510
        %v512 = vpop.xlane.xlu0 %511
        %v513 = vrcp.pop 32.0
        %v514 = vmul.f32 32.0, %v513
        %v515 = vsub.f32 1.0, %v514
        %v516 = vmul.f32 %v513, %v515
        %v517 = vadd.f32 %v513, %v516
        %vm518 = vweird.f32 %v513
        %v519 = vsel %vm518, %v513, %v517
        %v520 = vmul.f32 %v512, %v519
        %v521 = vsub.f32 %v506, %v520
        %v522 = vmul.f32 %v521, %v521
        %v523 = vsel %vm509, %v522, 0.0
        %524 = vadd.xlane.f32.xlu0 %v523
        %v525 = vpop.xlane.xlu0 %524
        %v526 = vmul.f32 %v525, %v519
        %v527 = vadd.f32 %v526, 1e-06
        %v528 = vrsqrt.pop %v527
        %v529 = vmul.f32 %v528, %v527
        %v530 = vmul.f32 %v529, %v528
        %v531 = vmul.f32 0.5, %v530
        %v532 = vsub.f32 1.5, %v531
        %v533 = vmul.f32 %v528, %v532
        %vm534 = vweird.f32 %v527
        %vm535 = vweird.f32 %v528
        %vm536 = vmor %vm534, %vm535
        %v537 = vsel %vm536, %v528, %v533
        %v538 = vmul.f32 %v521, %v537
        %v539 = vld [vmem:[%s7] sm:$0x1]
        %v541 = vperm.slane %v539, 0
        %v543 = vmul.f32 %v538, %v541
        %v544 = vld [vmem:[%s8] sm:$0x1]
        %v546 = vperm.slane %v544, 0
        %v548 = vadd.f32 %v543, %v546
        %v549 = vld [vmem:[%s9] sm:$0x1]
        %v551 = vperm.slane %v549, 0
        %v553 = vmul.f32 %v538, %v551
        %v554 = vld [vmem:[%s10] sm:$0x1]
        %v556 = vperm.slane %v554, 0
        %v558 = vadd.f32 %v553, %v556
        %v559 = vpack.c.bf16 %v548, %v548
        %v560 = vld [vmem:[%s3] sm:$0xf]
        %v561 = vld [vmem:[%s3 + $0x4] sm:$0xf]
        %v562 = vld [vmem:[%s3 + $0x8] sm:$0xf]
        %v563 = vld [vmem:[%s3 + $0xc] sm:$0xf]
        %v565 = vperm.slane %v508, 0
        %v571 = vunpack.c.l.b16 %v560
        %v572 = vunpack.c.l.b16 %v561
        %v573 = vunpack.c.l.b16 %v562
        %v574 = vunpack.c.l.b16 %v563
        %v575 = vpack.c.b16 %v572, %v571
        %v576 = vpack.c.b16 %v574, %v573
        %v580 = vsel %vm509, %v559, 0
        %582 = vmatpush.bf16.msra.mxu0 0
        %583 = vmatpush.bf16.msra.mxu0 0
        %584 = vmatpush.bf16.msra.mxu0 0
        %585 = vmatpush.bf16.msra.mxu0 0
        %586 = vmatpush.bf16.msra.mxu0 0
        %587 = vmatpush.bf16.msra.mxu0 0
        %588 = vmatpush.bf16.msra.mxu0 %v576
        %589 = vmatpush.bf16.msra.mxu0 %v575
        %590 = vmatmul.bf16.gmra.mxu0 %v580
        %v591 = vpop.f32.mrf.mxu0
        %v592 = vadd.f32 %v565, %v591
        %v593 = vpop.f32.mrf.mxu0
        %594 = vdwg.mxu0
        %v595 = vxor.u32 %v592, 2147483648
        %v596 = vmul.f32 %v595, 1.442695
        %v597 = vpow.pop %v596
        %v598 = vadd.f32 %v597, 1.0
        %v599 = vrcp.pop %v598
        %v600 = vmul.f32 %v598, %v599
        %v601 = vsub.f32 1.0, %v600
        %v602 = vmul.f32 %v599, %v601
        %v603 = vadd.f32 %v599, %v602
        %vm604 = vweird.f32 %v598
        %vm605 = vweird.f32 %v599
        %vm606 = vmor %vm604, %vm605
        %v607 = vsel %vm606, %v599, %v603
        %v608 = vand.u32 2147483647, %v598
        %vm609 = vcmp.eq.f32.partialorder %v608, 8.507059e+37
        %v610 = vand.u32 %v598, 2147483648
        %v611 = vor.u32 1.1754944e-38, %v610
        %v612 = vsel %vm609, %v611, %v607
        %v613 = vmul.f32 1.0, %v612
        %v614 = vtanh.pop %v592
        %v616 = vperm.slane %v507, 0
        %617 = vrot.lane.b32.xlu0 %v616, 32
        %v618 = vpop.permute.xlu0 %617
        %v620 = vmul.f32 %v613, %v618
        %622 = vrot.lane.b32.xlu0 %v614, 32
        %v623 = vpop.permute.xlu0 %622
        %v625 = vmul.f32 %v613, %v623
        %627 = vrot.lane.b32.xlu0 %v625, 32
        %v628 = vpop.permute.xlu0 %627
        %v630 = vadd.f32 %v620, %v628
        %v631 = vtanh.pop %v630
        %633 = vrot.lane.b32.xlu0 %v631, 32
        %v634 = vpop.permute.xlu0 %633
        %v636 = vmul.f32 %v613, %v634
        %v637 = vpack.c.bf16 %v558, %v558
        %v638 = vld [vmem:[%s5] sm:$0xf]
        %v639 = vld [vmem:[%s5 + $0x4] sm:$0xf]
        %v640 = vld [vmem:[%s5 + $0x8] sm:$0xf]
        %v641 = vld [vmem:[%s5 + $0xc] sm:$0xf]
        %v646 = vunpack.c.l.b16 %v638
        %v647 = vunpack.c.l.b16 %v639
        %v648 = vunpack.c.l.b16 %v640
        %v649 = vunpack.c.l.b16 %v641
        %v650 = vpack.c.b16 %v647, %v646
        %v651 = vpack.c.b16 %v649, %v648
        %v655 = vsel %vm509, %v637, 0
        %657 = vmatpush.bf16.msra.mxu0 0
        %658 = vmatpush.bf16.msra.mxu0 0
        %659 = vmatpush.bf16.msra.mxu0 0
        %660 = vmatpush.bf16.msra.mxu0 0
        %661 = vmatpush.bf16.msra.mxu0 0
        %662 = vmatpush.bf16.msra.mxu0 0
        %663 = vmatpush.bf16.msra.mxu0 %v651
        %664 = vmatpush.bf16.msra.mxu0 %v650
        %665 = vmatmul.bf16.gmra.mxu0 %v655
        %v666 = vpop.f32.mrf.mxu0
        %v667 = vadd.f32 0.0, %v666
        %v668 = vpop.f32.mrf.mxu0
        %669 = vdwg.mxu0
        %v670 = vmax.f32 %v667, 0.0
        %v671 = vpack.c.bf16 %v670, %v670
        %v672 = vld [vmem:[%s6] sm:$0xf]
        %v673 = vld [vmem:[%s6 + $0x4] sm:$0xf]
        %v674 = vld [vmem:[%s6 + $0x8] sm:$0xf]
        %v675 = vld [vmem:[%s6 + $0xc] sm:$0xf]
        %v676 = vld [vmem:[%s6 + $0x10] sm:$0xf]
        %v677 = vld [vmem:[%s6 + $0x14] sm:$0xf]
        %v678 = vld [vmem:[%s6 + $0x18] sm:$0xf]
        %v679 = vld [vmem:[%s6 + $0x1c] sm:$0xf]
        %v680 = vld [vmem:[%s6 + $0x20] sm:$0xf]
        %v681 = vld [vmem:[%s6 + $0x24] sm:$0xf]
        %v682 = vld [vmem:[%s6 + $0x28] sm:$0xf]
        %v683 = vld [vmem:[%s6 + $0x2c] sm:$0xf]
        %v684 = vld [vmem:[%s6 + $0x30] sm:$0xf]
        %v685 = vld [vmem:[%s6 + $0x34] sm:$0xf]
        %v686 = vld [vmem:[%s6 + $0x38] sm:$0xf]
        %v687 = vld [vmem:[%s6 + $0x3c] sm:$0xf]
        %v688 = vpack.c.bf16 %v636, %v636
        %v689 = vld [vmem:[%s4] sm:$0xf]
        %v690 = vld [vmem:[%s4 + $0x4] sm:$0xf]
        %v691 = vld [vmem:[%s4 + $0x8] sm:$0xf]
        %v692 = vld [vmem:[%s4 + $0xc] sm:$0xf]
        %694 = vrot.lane.b32.xlu0 %v688, 64
        %v695 = vpop.permute.xlu0 %694
        %v700 = vunpack.c.l.b16 %v689
        %v701 = vunpack.c.l.b16 %v690
        %v702 = vunpack.c.l.b16 %v691
        %v703 = vunpack.c.l.b16 %v692
        %v704 = vpack.c.b16 %v701, %v700
        %v705 = vpack.c.b16 %v703, %v702
        %v709 = vsel %vm509, %v695, 0
        %711 = vmatpush.bf16.msra.mxu0 0
        %712 = vmatpush.bf16.msra.mxu0 0
        %713 = vmatpush.bf16.msra.mxu0 0
        %714 = vmatpush.bf16.msra.mxu0 0
        %715 = vmatpush.bf16.msra.mxu0 0
        %716 = vmatpush.bf16.msra.mxu0 0
        %717 = vmatpush.bf16.msra.mxu0 %v705
        %718 = vmatpush.bf16.msra.mxu0 %v704
        %719 = vmatmul.bf16.gmra.mxu0 %v709
        %v720 = vpop.f32.mrf.mxu0
        %v721 = vadd.f32 0.0, %v720
        %v722 = vpop.f32.mrf.mxu0
        %723 = vdwg.mxu0
        %v740 = vunpack.c.l.b16 %v672
        %v741 = vunpack.c.l.b16 %v673
        %v742 = vunpack.c.l.b16 %v674
        %v743 = vunpack.c.l.b16 %v675
        %v744 = vunpack.c.l.b16 %v676
        %v745 = vunpack.c.l.b16 %v677
        %v746 = vunpack.c.l.b16 %v678
        %v747 = vunpack.c.l.b16 %v679
        %v748 = vunpack.c.l.b16 %v680
        %v749 = vunpack.c.l.b16 %v681
        %v750 = vunpack.c.l.b16 %v682
        %v751 = vunpack.c.l.b16 %v683
        %v752 = vunpack.c.l.b16 %v684
        %v753 = vunpack.c.l.b16 %v685
        %v754 = vunpack.c.l.b16 %v686
        %v755 = vunpack.c.l.b16 %v687
        %v756 = vpack.c.b16 %v741, %v740
        %v757 = vpack.c.b16 %v743, %v742
        %v758 = vpack.c.b16 %v745, %v744
        %v759 = vpack.c.b16 %v747, %v746
        %v760 = vpack.c.b16 %v749, %v748
        %v761 = vpack.c.b16 %v751, %v750
        %v762 = vpack.c.b16 %v753, %v752
        %v763 = vpack.c.b16 %v755, %v754
        %772 = vmatpush.bf16.msra.mxu0 %v763
        %773 = vmatpush.bf16.msra.mxu0 %v762
        %774 = vmatpush.bf16.msra.mxu0 %v761
        %775 = vmatpush.bf16.msra.mxu0 %v760
        %776 = vmatpush.bf16.msra.mxu0 %v759
        %777 = vmatpush.bf16.msra.mxu0 %v758
        %778 = vmatpush.bf16.msra.mxu0 %v757
        %779 = vmatpush.bf16.msra.mxu0 %v756
        %780 = vmatmul.bf16.gmra.mxu0 %v671
        %v781 = vpop.f32.mrf.mxu0
        %v782 = vadd.f32 %v721, %v781
        %v783 = vpop.f32.mrf.mxu0
        %784 = vdwg.mxu0
        %785 = vst.msk [vmem:[%s491] sm:$0xff] %vm509, %v782
        %p786 = scmp.eq.s32.totalorder %s36, 0
        // Predicated region
        $region65: #{tpu_custom_call.1} parent=63 // pred_check
          %p787 = pneg %p786
        $region66: #{tpu_custom_call.1} parent=63 // pred_check_branch
          %789 = sbr.rel (%p787) target = $region68
        $region67: #{tpu_custom_call.1} parent=63 // pred_region
          %791 = vrot.lane.b32.xlu0 %v630, 96
          %v792 = vpop.permute.xlu0 %791
          %vm794 = vcmask 261127
          %795 = vst.msk [vmem:[%s478 - $0x7] sm:$0x80] %vm794, %v792
          %797 = vrot.lane.b32.xlu0 %v636, 64
          %v798 = vpop.permute.xlu0 %797
          %800 = vst.msk [vmem:[%s484 - $0x7] sm:$0x80] %vm794, %v798
        $region68: #{tpu_custom_call.1} parent=63 // pred_fallthru
          _
        %s801 = sand.u32 %s299, 1
        %s802 = scalar_lea.sflag [#allocation3], %s801
        %s803 = sand.u32 %s299, 1
        %s804 = scalar_lea.vmem [#allocation2], %s803
        %s805 = sand.u32 %s31, 1
        %s806 = scalar_lea.sflag [#allocation5], %s805
        %s807 = sand.u32 %s325, 1
        %s808 = scalar_lea.vmem [#allocation4], %s807
        %s809 = sand.u32 %s31, 1
        %s810 = scalar_lea.sflag [#allocation5], %s809
        %s811 = sand.u32 %s353, 1
        %s812 = smul.addr %s811, 8
        %s813 = scalar_lea.vmem [#allocation6], %s812
        // Predicated region
        $region69: #{tpu_custom_call.1} parent=63 // pred_check
          %p814 = pneg %p309
        $region70: #{tpu_custom_call.1} parent=63 // pred_check_branch
          %816 = sbr.rel (%p814) target = $region72
        $region71: #{tpu_custom_call.1} parent=63 // pred_region
          %818 = vsyncadd %s802, 0
          %s819 = scalar_lea.hbm %s11, %s35
          %s821 = sshll.u32 %s804, 4
          %s822 = int_to_ptr.vmem [resolvable:$true] %s821
          %s823 = sshll.u32 %s819, 4
          %s824 = int_to_ptr.hbm [resolvable:$true] %s823
          %826 = dma.vmem_to_hbm [thread:$0]  %s822, 16, %s824, %s802
        $region72: #{tpu_custom_call.1} parent=63 // pred_fallthru
          _
        // Predicated region
        $region73: #{tpu_custom_call.1} parent=63 // pred_check
          %p827 = pneg %p335
        $region74: #{tpu_custom_call.1} parent=63 // pred_check_branch
          %829 = sbr.rel (%p827) target = $region76
        $region75: #{tpu_custom_call.1} parent=63 // pred_region
          %831 = vsyncadd %s806, 0
          %s832 = scalar_lea.hbm %s12, %s35
          %s834 = sshll.u32 %s808, 4
          %s835 = int_to_ptr.vmem [resolvable:$true] %s834
          %s836 = sshll.u32 %s832, 4
          %s837 = int_to_ptr.hbm [resolvable:$true] %s836
          %839 = dma.vmem_to_hbm [thread:$0]  %s835, 16, %s837, %s806
        $region76: #{tpu_custom_call.1} parent=63 // pred_fallthru
          _
        // Predicated region
        $region77: #{tpu_custom_call.1} parent=63 // pred_check
          %p840 = pneg %p363
        $region78: #{tpu_custom_call.1} parent=63 // pred_check_branch
          %842 = sbr.rel (%p840) target = $region80
        $region79: #{tpu_custom_call.1} parent=63 // pred_region
          %844 = vsyncadd %s810, 0
          %s845 = sadd.s32 %s36, %s35
          %s846 = smul.addr %s845, 8
          %s847 = scalar_lea.hbm %s13, %s846
          %s849 = sshll.u32 %s813, 4
          %s850 = int_to_ptr.vmem [resolvable:$true] %s849
          %s851 = sshll.u32 %s847, 4
          %s852 = int_to_ptr.hbm [resolvable:$true] %s851
          %854 = dma.vmem_to_hbm [thread:$0]  %s850, 128, %s852, %s810
        $region80: #{tpu_custom_call.1} parent=63 // pred_fallthru
          _
      $region64: #{tpu_custom_call.1} parent=5 // pred_fallthru
        _
      %p855 = scmp.le.s32.totalorder 2, %s26
      // Predicated region
      $region81: #{tpu_custom_call.1} parent=5 // pred_check
        %p856 = pneg %p855
      $region82: #{tpu_custom_call.1} parent=5 // pred_check_branch
        %858 = sbr.rel (%p856) target = $region84
      $region83: #{tpu_custom_call.1} parent=5 // pred_region
        %s859 = ssub.s32 %s26, 2
        // Predicated region
        $region85: #{tpu_custom_call.1} parent=83 // pred_check
          %p860 = pneg %p315
        $region86: #{tpu_custom_call.1} parent=83 // pred_check_branch
          %862 = sbr.rel (%p860) target = $region88
        $region87: #{tpu_custom_call.1} parent=83 // pred_region
          %s863 = sand.u32 %s300, 1
          %s864 = scalar_lea.sflag [#allocation3], %s863
          %s865 = sand.u32 %s300, 1
          %s866 = scalar_lea.vmem [#allocation2], %s865
          %868 = dma.done %s864, 16
        $region88: #{tpu_custom_call.1} parent=83 // pred_fallthru
          _
        // Predicated region
        $region89: #{tpu_custom_call.1} parent=83 // pred_check
          %p869 = pneg %p341
        $region90: #{tpu_custom_call.1} parent=83 // pred_check_branch
          %871 = sbr.rel (%p869) target = $region92
        $region91: #{tpu_custom_call.1} parent=83 // pred_region
          %s872 = sand.u32 %s32, 1
          %s873 = scalar_lea.sflag [#allocation5], %s872
          %s874 = sand.u32 %s326, 1
          %s875 = scalar_lea.vmem [#allocation4], %s874
          %877 = dma.done %s873, 16
        $region92: #{tpu_custom_call.1} parent=83 // pred_fallthru
          _
        // Predicated region
        $region93: #{tpu_custom_call.1} parent=83 // pred_check
          %p878 = pneg %p369
        $region94: #{tpu_custom_call.1} parent=83 // pred_check_branch
          %880 = sbr.rel (%p878) target = $region96
        $region95: #{tpu_custom_call.1} parent=83 // pred_region
          %s881 = sand.u32 %s32, 1
          %s882 = scalar_lea.sflag [#allocation5], %s881
          %s883 = sand.u32 %s354, 1
          %s884 = smul.addr %s883, 8
          %s885 = scalar_lea.vmem [#allocation6], %s884
          %887 = dma.done %s882, 128
        $region96: #{tpu_custom_call.1} parent=83 // pred_fallthru
          _
      $region84: #{tpu_custom_call.1} parent=5 // pred_fallthru
        _
    $region6: #{tpu_custom_call.1} parent=1 // loop_footer
      %s30 = sadd.s32 1, %s26
    $region7: #{tpu_custom_call.1} parent=1 // loop_footer_branch
      %25 = sbr.rel target = $region3
    $region8: #{tpu_custom_call.1} parent=1 // loop_exit
      _
    %888 = vsyncpa [#allocation3], 1
    %s889 = scalar_lea.sflag [#allocation3], 1
    %890 = vsyncpa %s889, 1
    %891 = vsyncpa [#allocation5], 1
    %s892 = scalar_lea.sflag [#allocation5], 1
    %893 = vsyncpa %s892, 1

</llo_original>
